<compile_context>
chip_gen: v7x
topology: tpu7x:2x2x1
jax: 0.10.0
libtpu: 0.0.40
codegen_flags: <defaults>
</compile_context>

<pallas_src>
import functools

import jax
import jax.numpy as jnp
import numpy as np
from jax import lax
from jax.experimental import pallas as pl
from jax.experimental.pallas import tpu as pltpu


# Shift groups of the 3x3/stride-2 conv over the 2x2 space-to-depth layout:
# (row shift, col shift, number of sub-pixel channel groups, row offset in the
#  packed stem weight, in units of ctot).
_SHIFT_GROUPS = ((0, 0, 4, 0), (0, 1, 3, 4), (1, 0, 2, 7), (1, 1, 1, 9))


# ----------------------------------------------------------------------------
# Fused kernel: joint conv stem (img|txt) -> FPN 1x1 fusion -> width-mean.
# One batch element per grid step.
# ----------------------------------------------------------------------------
def _fused_forward_kernel(x_ref, ws_ref, bs_ref, wft_ref, bf_ref, sel_ref,
                          feats_ref, row_ref, *, ho, wo, ctot):
    m = ho * wo
    x = x_ref[0]                            # (ho+1, wo+1, 4*ctot) bf16

    # Stem: 3x3/stride-2 conv of the concatenated [img | txt] channels,
    # expressed as 4 unit-stride slices of the space-to-depth layout, each
    # contracted against its packed weight group.  The img/txt weights write
    # into disjoint halves of the 2*cb output channels (zero-extended in the
    # wrapper), so one accumulation yields the concatenated stem features.
    acc = None
    for di, dj, npc, roff in _SHIFT_GROUPS:
        k = npc * ctot
        tap = x[di:di + ho, dj:dj + wo, :k].reshape(m, k)        # (m, k) bf16
        w_g = ws_ref[roff * ctot:roff * ctot + k, :]             # (k, 2cb) bf16
        contrib = jnp.dot(tap, w_g, preferred_element_type=jnp.float32)
        acc = contrib if acc is None else acc + contrib
    stem = jnp.maximum(acc + bs_ref[...], 0.0)                   # (m, 2cb) f32
    stem_bf = stem.astype(jnp.bfloat16)

    # FPN lateral fusion: both 1x1 branches as ONE contraction over 2*cb,
    # computed transposed so the feats0 store is lane-dense ((cf, m), spatial
    # axis on lanes) and is directly NCHW after a free wrapper reshape.
    fpre_t = lax.dot_general(wft_ref[...], stem_bf,
                             dimension_numbers=(((1,), (1,)), ((), ())),
                             preferred_element_type=jnp.float32)  # (cf, m)
    feat_t = jnp.maximum(fpre_t + bf_ref[...], 0.0)               # (cf, m) f32
    feats_ref[0] = feat_t.astype(jnp.bfloat16)

    # row_feats = mean over width, as a matmul against the constant 1/wo
    # selector (hoisted to an input; avoids any lane-dim reshape of feat_t).
    row_ref[0] = jnp.dot(feat_t, sel_ref[...],
                         preferred_element_type=jnp.float32)      # (cf, ho)


# ----------------------------------------------------------------------------
# Plain-JAX glue: compact space-to-depth re-layout + BN folding / weight packing.
# ----------------------------------------------------------------------------
def _space_to_depth_pad(x_nchw):
    """NCHW -> zero-pad(1) -> 2x2 space-to-depth -> (B, H/2+1, W/2+1, 4*C) bf16."""
    x = jnp.transpose(x_nchw, (0, 2, 3, 1))                   # NHWC
    x = jnp.pad(x, ((0, 0), (1, 1), (1, 1), (0, 0)))
    b, hp, wp, c = x.shape
    x = x.reshape(b, hp // 2, 2, wp // 2, 2, c)
    x = jnp.transpose(x, (0, 1, 3, 2, 4, 5))                  # (b, hp/2, wp/2, 2, 2, c)
    return x.reshape(b, hp // 2, wp // 2, 4 * c).astype(jnp.bfloat16)


def _fold_bn(w, b, gamma, beta, mean, var, eps=1e-5):
    """Fold inference-mode BatchNorm into matmul weight (K, N) and bias (N,)."""
    s = gamma / jnp.sqrt(var + eps)
    return w * s[None, :], (b - mean) * s + beta


def make_raw_params(key, c_img=3, c_txt=1, c_backbone=8, c_fpn=16):
    ks = jax.random.split(key, 4)

    def conv_bn(k, cin, cout):
        k1, k2 = jax.random.split(k)
        return dict(
            w=jax.random.normal(k1, (9 * cin, cout), jnp.float32) * 0.1,
            b=jnp.zeros((cout,), jnp.float32),
            gamma=jnp.ones((cout,), jnp.float32),
            beta=jnp.zeros((cout,), jnp.float32),
            mean=jax.random.normal(k2, (cout,), jnp.float32) * 0.01,
            var=jnp.ones((cout,), jnp.float32),
        )

    return dict(
        stem_img=conv_bn(ks[0], c_img, c_backbone),
        stem_txt=conv_bn(ks[1], c_txt, c_backbone),
        fpn_wi=jax.random.normal(ks[2], (c_backbone, c_fpn), jnp.float32) * 0.1,
        fpn_wt=jax.random.normal(ks[3], (c_backbone, c_fpn), jnp.float32) * 0.1,
        fpn_b=jnp.zeros((c_fpn,), jnp.float32),
    )


def pack_params(raw):
    """Fold BN, build the joint shift-group stem weight, cast to bf16."""
    wi, bi = _fold_bn(**raw["stem_img"])          # (9*ci, cb), (cb,)
    wt, bt = _fold_bn(**raw["stem_txt"])          # (9*ct, cb), (cb,)
    cb = wi.shape[1]
    ci = wi.shape[0] // 9
    ct = wt.shape[0] // 9
    ctot = ci + ct
    wi3 = wi.reshape(9, ci, cb)
    wt3 = wt.reshape(9, ct, cb)

    def tap_w(i, j):
        """Joint (ctot, 2cb) weight for conv tap (i, j), zero-extended halves."""
        t = 3 * i + j
        w_img = jnp.concatenate([wi3[t], jnp.zeros((ci, cb), jnp.float32)], axis=1)
        w_txt = jnp.concatenate([jnp.zeros((ct, cb), jnp.float32), wt3[t]], axis=1)
        return jnp.concatenate([w_img, w_txt], axis=0)          # (ctot, 2cb)

    zeros = jnp.zeros((ctot, 2 * cb), jnp.float32)
    # Shift-group packing matching _SHIFT_GROUPS / the space-to-depth channel
    # order pc = 2*(i%2) + (j%2):
    w_stem = jnp.concatenate([
        tap_w(0, 0), tap_w(0, 1), tap_w(1, 0), tap_w(1, 1),   # shift (0,0): pc 0..3
        tap_w(0, 2), zeros, tap_w(1, 2),                      # shift (0,1): pc 0..2
        tap_w(2, 0), tap_w(2, 1),                             # shift (1,0): pc 0..1
        tap_w(2, 2),                                          # shift (1,1): pc 0
    ], axis=0)                                                # (10*ctot, 2cb)

    b_stem = jnp.concatenate([bi, bt])[None, :]               # (1, 2cb)
    wf = jnp.concatenate([raw["fpn_wi"], raw["fpn_wt"]], axis=0)  # (2cb, cf)
    return dict(
        w_stem=w_stem.astype(jnp.bfloat16),
        b_stem=b_stem.astype(jnp.float32),
        wf_t=wf.T.astype(jnp.bfloat16),                       # (cf, 2cb)
        b_fpn=raw["fpn_b"][:, None].astype(jnp.float32),      # (cf, 1)
    )


# ----------------------------------------------------------------------------
# Forward pass (inference path)
# ----------------------------------------------------------------------------
def model_forward(packed, images_nchw, text_masks_nchw):
    b, ci, h, w = images_nchw.shape
    ct = text_masks_nchw.shape[1]
    assert h % 2 == 0 and w % 2 == 0, "stride-2 stem expects even spatial dims"
    ho, wo = h // 2, w // 2
    m = ho * wo
    ctot = ci + ct
    cf, c2 = packed["wf_t"].shape

    # Joint channel space-to-depth re-layout (one compact HBM activation).
    x = jnp.concatenate([images_nchw, text_masks_nchw], axis=1)   # (b, ctot, h, w)
    x_s2d = _space_to_depth_pad(x)              # (b, ho+1, wo+1, 4*ctot) bf16

    # Constant width-mean selector, hoisted out of the kernel (fetched once).
    m_idx = lax.broadcasted_iota(jnp.int32, (m, ho), 0)
    h_idx = lax.broadcasted_iota(jnp.int32, (m, ho), 1)
    sel = jnp.where((m_idx >= h_idx * wo) & (m_idx < (h_idx + 1) * wo),
                    jnp.float32(1.0 / wo), jnp.float32(0.0))      # (m, ho) f32

    kern = functools.partial(_fused_forward_kernel, ho=ho, wo=wo, ctot=ctot)
    feats0_t, row_feats = pl.pallas_call(
        kern,
        out_shape=(jax.ShapeDtypeStruct((b, cf, m), jnp.bfloat16),
                   jax.ShapeDtypeStruct((b, cf, ho), jnp.float32)),
        grid=(b,),
        in_specs=[
            pl.BlockSpec((1, ho + 1, wo + 1, 4 * ctot), lambda i: (i, 0, 0, 0)),
            pl.BlockSpec((10 * ctot, c2), lambda i: (0, 0)),
            pl.BlockSpec((1, c2), lambda i: (0, 0)),
            pl.BlockSpec((cf, c2), lambda i: (0, 0)),
            pl.BlockSpec((cf, 1), lambda i: (0, 0)),
            pl.BlockSpec((m, ho), lambda i: (0, 0)),
        ],
        out_specs=(
            pl.BlockSpec((1, cf, m), lambda i: (i, 0, 0)),
            pl.BlockSpec((1, cf, ho), lambda i: (i, 0, 0)),
        ),
        compiler_params=pltpu.CompilerParams(dimension_semantics=("parallel",)),
    )(x_s2d, packed["w_stem"], packed["b_stem"], packed["wf_t"],
      packed["b_fpn"], sel)

    feats0 = feats0_t.reshape(b, cf, ho, wo)   # NCHW (PyTorch layout), free reshape
    # row_feats is already (B, C, H) — the torch.mean(feats[0], dim=3) convention.
    # TODO(synk): SegmentPredictor / HeadBodyDividePredictor / PAN /
    # CellsExtractor / Merger bodies are not defined in the provided source;
    # nothing concrete to translate for those heads.
    return feats0, row_feats


# ----------------------------------------------------------------------------
# Plain-JAX/XLA reference (independent im2col path) for correctness checking.
# ----------------------------------------------------------------------------
def reference_forward(raw, images_nchw, text_masks_nchw):
    wi, bi = _fold_bn(**raw["stem_img"])
    wt, bt = _fold_bn(**raw["stem_txt"])

    def im2col(x_nchw):
        x = jnp.transpose(x_nchw, (0, 2, 3, 1))
        b, h, w, c = x.shape
        xp = jnp.pad(x, ((0, 0), (1, 1), (1, 1), (0, 0)))
        ho, wo = h // 2, w // 2
        taps = [xp[:, i:i + 2 * ho:2, j:j + 2 * wo:2, :]
                for i in range(3) for j in range(3)]
        p = jnp.concatenate(taps, axis=-1).astype(jnp.bfloat16)
        return p.reshape(b * ho * wo, 9 * c), ho, wo

    p_img, ho, wo = im2col(images_nchw)
    p_txt, _, _ = im2col(text_masks_nchw)
    b = images_nchw.shape[0]

    img_feat = jnp.maximum(
        jnp.dot(p_img, wi.astype(jnp.bfloat16),
                preferred_element_type=jnp.float32) + bi, 0.0).astype(jnp.bfloat16)
    txt_feat = jnp.maximum(
        jnp.dot(p_txt, wt.astype(jnp.bfloat16),
                preferred_element_type=jnp.float32) + bt, 0.0).astype(jnp.bfloat16)
    feat = jnp.maximum(
        jnp.dot(img_feat, raw["fpn_wi"].astype(jnp.bfloat16),
                preferred_element_type=jnp.float32)
        + jnp.dot(txt_feat, raw["fpn_wt"].astype(jnp.bfloat16),
                  preferred_element_type=jnp.float32)
        + raw["fpn_b"][None, :], 0.0)                              # (b*m, cf) f32
    cf = feat.shape[-1]
    feat4 = feat.reshape(b, ho, wo, cf)
    feats0 = jnp.transpose(feat4, (0, 3, 1, 2)).astype(jnp.bfloat16)  # NCHW
    row_feats = jnp.transpose(jnp.mean(feat4, axis=2), (0, 2, 1))     # (b, cf, ho)
    return feats0, row_feats


if __name__ == "__main__":
    key = jax.random.PRNGKey(0)
    k_img, k_txt, k_par = jax.random.split(key, 3)

    B, H, W = 2, 16, 16
    images = jax.random.normal(k_img, (B, 3, H, W), jnp.float32)        # NCHW
    text_masks = (jax.random.uniform(k_txt, (B, 1, H, W)) > 0.5
                  ).astype(jnp.float32)                                  # NCHW
    raw = make_raw_params(k_par)
    packed = pack_params(raw)

    feats0, row_feats = jax.jit(model_forward)(packed, images, text_masks)
    jax.block_until_ready((feats0, row_feats))

    assert feats0.shape == (B, 16, H // 2, W // 2) and feats0.dtype == jnp.bfloat16
    assert row_feats.shape == (B, 16, H // 2) and row_feats.dtype == jnp.float32

    ref_feats0, ref_row = reference_forward(raw, images, text_masks)
    np.testing.assert_allclose(np.asarray(feats0.astype(jnp.float32)),
                               np.asarray(ref_feats0.astype(jnp.float32)),
                               atol=5e-2, rtol=5e-2)
    np.testing.assert_allclose(np.asarray(row_feats), np.asarray(ref_row),
                               atol=2e-2, rtol=2e-2)
    print("KERNEL_OK")
</pallas_src>

<mosaic_0001>
module attributes {stable_mosaic.version = 11 : i64} {
  func.func @_fused_forward_kernel(%arg0: i32, %arg1: memref<1x9x9x16xbf16, #tpu.memory_space<vmem>>, %arg2: memref<40x16xbf16, #tpu.memory_space<vmem>>, %arg3: memref<1x16xf32, #tpu.memory_space<vmem>>, %arg4: memref<16x16xbf16, #tpu.memory_space<vmem>>, %arg5: memref<16x1xf32, #tpu.memory_space<vmem>>, %arg6: memref<64x8xf32, #tpu.memory_space<vmem>>, %arg7: memref<1x16x64xbf16, #tpu.memory_space<vmem>>, %arg8: memref<1x16x8xf32, #tpu.memory_space<vmem>>) attributes {dimension_semantics = [#tpu.dimension_semantics<parallel>], iteration_bounds = array<i64: 2>, scalar_prefetch = 0 : i64, scratch_operands = 0 : i64, tpu.core_type = #tpu.core_type<tc>, window_params = [{transform_indices = @transform_0, window_bounds = array<i64: 1, 9, 9, 16>}, {pipeline_mode = #tpu.pipeline_mode<synchronous>, transform_indices = @transform_1, window_bounds = array<i64: 40, 16>}, {pipeline_mode = #tpu.pipeline_mode<synchronous>, transform_indices = @transform_2, window_bounds = array<i64: 1, 16>}, {pipeline_mode = #tpu.pipeline_mode<synchronous>, transform_indices = @transform_3, window_bounds = array<i64: 16, 16>}, {pipeline_mode = #tpu.pipeline_mode<synchronous>, transform_indices = @transform_4, window_bounds = array<i64: 16, 1>}, {pipeline_mode = #tpu.pipeline_mode<synchronous>, transform_indices = @transform_5, window_bounds = array<i64: 64, 8>}, {transform_indices = @transform_6, window_bounds = array<i64: 1, 16, 64>}, {transform_indices = @transform_7, window_bounds = array<i64: 1, 16, 8>}]} {
    %c0 = arith.constant 0 : index
    %c0_0 = arith.constant 0 : index
    %c0_1 = arith.constant 0 : index
    %c0_2 = arith.constant 0 : index
    %0 = vector.load %arg1[%c0, %c0_0, %c0_1, %c0_2] : memref<1x9x9x16xbf16, #tpu.memory_space<vmem>>, vector<1x9x9x16xbf16>
    %1 = vector.shape_cast %0 : vector<1x9x9x16xbf16> to vector<9x9x16xbf16>
    %2 = vector.extract_strided_slice %1 {offsets = [0, 0, 0], sizes = [8, 8, 16], strides = [1, 1, 1]} : vector<9x9x16xbf16> to vector<8x8x16xbf16>
    %3 = vector.shape_cast %2 : vector<8x8x16xbf16> to vector<64x16xbf16>
    %c0_3 = arith.constant 0 : index
    %c0_4 = arith.constant 0 : index
    %4 = vector.load %arg2[%c0_3, %c0_4] : memref<40x16xbf16, #tpu.memory_space<vmem>>, vector<16x16xbf16>
    %cst = arith.constant dense<0.000000e+00> : vector<64x16xf32>
    %5 = tpu.matmul %3, %4, %cst {dimension_numbers = #tpu.dot_dimension_numbers<[1], [0], [0], [1], [0, 0, 1, 1], [], []>} : vector<64x16xbf16>, vector<16x16xbf16>, vector<64x16xf32> -> vector<64x16xf32>
    %6 = vector.extract_strided_slice %1 {offsets = [0, 1, 0], sizes = [8, 8, 12], strides = [1, 1, 1]} : vector<9x9x16xbf16> to vector<8x8x12xbf16>
    %7 = vector.shape_cast %6 : vector<8x8x12xbf16> to vector<64x12xbf16>
    %c16 = arith.constant 16 : index
    %c0_5 = arith.constant 0 : index
    %8 = vector.load %arg2[%c16, %c0_5] : memref<40x16xbf16, #tpu.memory_space<vmem>>, vector<12x16xbf16>
    %cst_6 = arith.constant dense<0.000000e+00> : vector<64x16xf32>
    %9 = tpu.matmul %7, %8, %cst_6 {dimension_numbers = #tpu.dot_dimension_numbers<[1], [0], [0], [1], [0, 0, 1, 1], [], []>} : vector<64x12xbf16>, vector<12x16xbf16>, vector<64x16xf32> -> vector<64x16xf32>
    %10 = arith.addf %5, %9 : vector<64x16xf32>
    %11 = vector.extract_strided_slice %1 {offsets = [1, 0, 0], sizes = [8, 8, 8], strides = [1, 1, 1]} : vector<9x9x16xbf16> to vector<8x8x8xbf16>
    %12 = vector.shape_cast %11 : vector<8x8x8xbf16> to vector<64x8xbf16>
    %c28 = arith.constant 28 : index
    %c0_7 = arith.constant 0 : index
    %13 = vector.load %arg2[%c28, %c0_7] : memref<40x16xbf16, #tpu.memory_space<vmem>>, vector<8x16xbf16>
    %cst_8 = arith.constant dense<0.000000e+00> : vector<64x16xf32>
    %14 = tpu.matmul %12, %13, %cst_8 {dimension_numbers = #tpu.dot_dimension_numbers<[1], [0], [0], [1], [0, 0, 1, 1], [], []>} : vector<64x8xbf16>, vector<8x16xbf16>, vector<64x16xf32> -> vector<64x16xf32>
    %15 = arith.addf %10, %14 : vector<64x16xf32>
    %16 = vector.extract_strided_slice %1 {offsets = [1, 1, 0], sizes = [8, 8, 4], strides = [1, 1, 1]} : vector<9x9x16xbf16> to vector<8x8x4xbf16>
    %17 = vector.shape_cast %16 : vector<8x8x4xbf16> to vector<64x4xbf16>
    %c36 = arith.constant 36 : index
    %c0_9 = arith.constant 0 : index
    %18 = vector.load %arg2[%c36, %c0_9] : memref<40x16xbf16, #tpu.memory_space<vmem>>, vector<4x16xbf16>
    %cst_10 = arith.constant dense<0.000000e+00> : vector<64x16xf32>
    %19 = tpu.matmul %17, %18, %cst_10 {dimension_numbers = #tpu.dot_dimension_numbers<[1], [0], [0], [1], [0, 0, 1, 1], [], []>} : vector<64x4xbf16>, vector<4x16xbf16>, vector<64x16xf32> -> vector<64x16xf32>
    %20 = arith.addf %15, %19 : vector<64x16xf32>
    %c0_11 = arith.constant 0 : index
    %c0_12 = arith.constant 0 : index
    %21 = vector.load %arg3[%c0_11, %c0_12] : memref<1x16xf32, #tpu.memory_space<vmem>>, vector<1x16xf32>
    %22 = vector.broadcast %21 : vector<1x16xf32> to vector<64x16xf32>
    %23 = arith.addf %20, %22 : vector<64x16xf32>
    %cst_13 = arith.constant 0.000000e+00 : f32
    %24 = vector.broadcast %cst_13 : f32 to vector<64x16xf32>
    %25 = arith.maximumf %23, %24 : vector<64x16xf32>
    %26 = arith.truncf %25 : vector<64x16xf32> to vector<64x16xbf16>
    %c0_14 = arith.constant 0 : index
    %c0_15 = arith.constant 0 : index
    %27 = vector.load %arg4[%c0_14, %c0_15] : memref<16x16xbf16, #tpu.memory_space<vmem>>, vector<16x16xbf16>
    %cst_16 = arith.constant dense<0.000000e+00> : vector<16x64xf32>
    %28 = tpu.matmul %27, %26, %cst_16 {dimension_numbers = #tpu.dot_dimension_numbers<[1], [1], [0], [0], [0, 0, 1, 0], [], []>} : vector<16x16xbf16>, vector<64x16xbf16>, vector<16x64xf32> -> vector<16x64xf32>
    %c0_17 = arith.constant 0 : index
    %c0_18 = arith.constant 0 : index
    %29 = vector.load %arg5[%c0_17, %c0_18] : memref<16x1xf32, #tpu.memory_space<vmem>>, vector<16x1xf32>
    %30 = vector.broadcast %29 : vector<16x1xf32> to vector<16x64xf32>
    %31 = arith.addf %28, %30 : vector<16x64xf32>
    %cst_19 = arith.constant 0.000000e+00 : f32
    %32 = vector.broadcast %cst_19 : f32 to vector<16x64xf32>
    %33 = arith.maximumf %31, %32 : vector<16x64xf32>
    %34 = arith.truncf %33 : vector<16x64xf32> to vector<16x64xbf16>
    %c0_20 = arith.constant 0 : index
    %c0_21 = arith.constant 0 : index
    %c0_22 = arith.constant 0 : index
    %35 = vector.load %arg7[%c0_20, %c0_21, %c0_22] : memref<1x16x64xbf16, #tpu.memory_space<vmem>>, vector<1x16x64xbf16>
    %36 = vector.shape_cast %35 : vector<1x16x64xbf16> to vector<16x64xbf16>
    %37 = vector.shape_cast %34 : vector<16x64xbf16> to vector<1x16x64xbf16>
    tpu.vector_store %arg7[%c0_20, %c0_21, %c0_22], %37 {strides = array<i32>} : memref<1x16x64xbf16, #tpu.memory_space<vmem>>, vector<1x16x64xbf16>,
    %c0_23 = arith.constant 0 : index
    %c0_24 = arith.constant 0 : index
    %38 = vector.load %arg6[%c0_23, %c0_24] : memref<64x8xf32, #tpu.memory_space<vmem>>, vector<64x8xf32>
    %cst_25 = arith.constant dense<0.000000e+00> : vector<16x8xf32>
    %39 = tpu.matmul %33, %38, %cst_25 {dimension_numbers = #tpu.dot_dimension_numbers<[1], [0], [0], [1], [0, 0, 1, 1], [], []>} : vector<16x64xf32>, vector<64x8xf32>, vector<16x8xf32> -> vector<16x8xf32>
    %c0_26 = arith.constant 0 : index
    %c0_27 = arith.constant 0 : index
    %c0_28 = arith.constant 0 : index
    %40 = vector.load %arg8[%c0_26, %c0_27, %c0_28] : memref<1x16x8xf32, #tpu.memory_space<vmem>>, vector<1x16x8xf32>
    %41 = vector.shape_cast %40 : vector<1x16x8xf32> to vector<16x8xf32>
    %42 = vector.shape_cast %39 : vector<16x8xf32> to vector<1x16x8xf32>
    tpu.vector_store %arg8[%c0_26, %c0_27, %c0_28], %42 {strides = array<i32>} : memref<1x16x8xf32, #tpu.memory_space<vmem>>, vector<1x16x8xf32>,
    return
  }
  func.func @transform_0(%arg0: i32) -> (i32, i32, i32, i32) {
    %c0_i32 = arith.constant 0 : i32
    %c0_i32_0 = arith.constant 0 : i32
    %c0_i32_1 = arith.constant 0 : i32
    %c0_i32_2 = arith.constant 0 : i32
    return %arg0, %c0_i32, %c0_i32_0, %c0_i32_1 : i32, i32, i32, i32
  }
  func.func @transform_1(%arg0: i32) -> (i32, i32) {
    %c0_i32 = arith.constant 0 : i32
    %c0_i32_0 = arith.constant 0 : i32
    %c0_i32_1 = arith.constant 0 : i32
    return %c0_i32, %c0_i32_0 : i32, i32
  }
  func.func @transform_2(%arg0: i32) -> (i32, i32) {
    %c0_i32 = arith.constant 0 : i32
    %c0_i32_0 = arith.constant 0 : i32
    %c0_i32_1 = arith.constant 0 : i32
    return %c0_i32, %c0_i32_0 : i32, i32
  }
  func.func @transform_3(%arg0: i32) -> (i32, i32) {
    %c0_i32 = arith.constant 0 : i32
    %c0_i32_0 = arith.constant 0 : i32
    %c0_i32_1 = arith.constant 0 : i32
    return %c0_i32, %c0_i32_0 : i32, i32
  }
  func.func @transform_4(%arg0: i32) -> (i32, i32) {
    %c0_i32 = arith.constant 0 : i32
    %c0_i32_0 = arith.constant 0 : i32
    %c0_i32_1 = arith.constant 0 : i32
    return %c0_i32, %c0_i32_0 : i32, i32
  }
  func.func @transform_5(%arg0: i32) -> (i32, i32) {
    %c0_i32 = arith.constant 0 : i32
    %c0_i32_0 = arith.constant 0 : i32
    %c0_i32_1 = arith.constant 0 : i32
    return %c0_i32, %c0_i32_0 : i32, i32
  }
  func.func @transform_6(%arg0: i32) -> (i32, i32, i32) {
    %c0_i32 = arith.constant 0 : i32
    %c0_i32_0 = arith.constant 0 : i32
    %c0_i32_1 = arith.constant 0 : i32
    return %arg0, %c0_i32, %c0_i32_0 : i32, i32, i32
  }
  func.func @transform_7(%arg0: i32) -> (i32, i32, i32) {
    %c0_i32 = arith.constant 0 : i32
    %c0_i32_0 = arith.constant 0 : i32
    %c0_i32_1 = arith.constant 0 : i32
    return %arg0, %c0_i32, %c0_i32_0 : i32, i32, i32
  }
}

</mosaic_0001>

<llo_original>
// kernel: model_forward.1
$region0: #{model_forward.1}
  #allocation0 [shape = 'u32[]', space=smem, size = 0x4, offset = 0x4, fixed_abs, tag = 'smem constant byte address 0x4 - core index']
  #allocation1 [shape = 'u32[144,128]{1,0:T(1,128)}', space=vmem, size = 0x12000, scoped, tag = 'internal scratch']
  %s0 = inlined_call_operand.vmem [shape: bf16[2,9,9,16], index: 0, kind: input, shape index: {}]
  %s1 = inlined_call_operand.vmem [shape: bf16[40,16], index: 1, kind: input, shape index: {}]
  %s2 = inlined_call_operand.vmem [shape: f32[1,16], index: 2, kind: input, shape index: {}]
  %s3 = inlined_call_operand.vmem [shape: bf16[16,16], index: 3, kind: input, shape index: {}]
  %s4 = inlined_call_operand.vmem [shape: f32[16,1], index: 4, kind: input, shape index: {}]
  %s5 = inlined_call_operand.vmem [shape: f32[64,8], index: 5, kind: input, shape index: {}]
  %s6 = inlined_call_operand.vmem [shape: bf16[2,16,64], index: 6, kind: output, shape index: {0}]
  %s7 = inlined_call_operand.vmem [shape: f32[2,16,8], index: 7, kind: output, shape index: {1}]
  %8 = xla_tuple %s6, %s7
  %s9 = sld [smem:[#allocation0]]
  $region65: #{model_forward.1} parent=0
    _
  %s11 = ssub.s32 1, %s9
  %s12 = scalar_select 0, %s11, %s9
  loop: start=0, step=1, limit=4
  $region2: #{model_forward.1} parent=0 // loop_pre_header
    _
  $region3: #{model_forward.1} parent=0 // loop_header
    %s14 = sphi 0, %s18
    %p15 = scmp.ge.s32.totalorder %s14, 4
    %s24 = sphi 0, %s26
    %s27 = sphi 0, %s24
    %s28 = sphi 0, %s27
    %s44 = sphi 0, %s28
    %s48 = sphi 0, %s48
    %s50 = sphi 0, %s48
    %s51 = sphi 0, %s50
    %s65 = sphi 0, %s51
    %s69 = sphi 0, %s69
    %s71 = sphi 0, %s69
    %s72 = sphi 0, %s71
    %s86 = sphi 0, %s72
    %s90 = sphi 0, %s90
    %s92 = sphi 0, %s90
    %s93 = sphi 0, %s92
    %s107 = sphi 0, %s93
    %s111 = sphi 0, %s111
    %s113 = sphi 0, %s111
    %s114 = sphi 0, %s113
    %s128 = sphi 0, %s114
    %s132 = sphi 0, %s132
    %s134 = sphi 0, %s132
    %s135 = sphi 0, %s134
    %s149 = sphi 0, %s135
    %s155 = sphi 0, %s157
    %s158 = sphi 0, %s155
    %s159 = sphi 0, %s158
    %s175 = sphi 0, %s159
    %s181 = sphi 0, %s183
    %s184 = sphi 0, %s181
    %s185 = sphi 0, %s184
    %s201 = sphi 0, %s185
  $region4: #{model_forward.1} parent=0 // loop_header_branch
    %17 = sbr.rel (%p15) target = $region8
  $region5: #{model_forward.1} parent=0 // loop_body
    %s19 = ssub.s32 %s14, 1
    %s20 = ssub.s32 %s14, 2
    %s21 = sadd.s32 %s14, 1
    %s22 = ssub.s32 %s14, %s21
    %p23 = scmp.eq.s32.totalorder %s22, 0
    %s25 = sadd.s32 %s24, 1
    %s26 = scalar_select %p23, %s24, %s25
    %p29 = pneg %p23
    %p30 = scmp.eq.s32.totalorder %s14, 1
    %p31 = por %p29, %p30
    %p32 = scmp.ne.s32.totalorder %s24, %s27
    %p33 = scmp.eq.s32.totalorder %s14, 0
    %p34 = por %p32, %p33
    %p35 = scmp.ne.s32.totalorder %s24, %s27
    %p36 = scmp.eq.s32.totalorder %s19, 1
    %p37 = por %p35, %p36
    %p38 = scmp.ne.s32.totalorder %s27, %s28
    %p39 = scmp.eq.s32.totalorder %s19, 0
    %p40 = por %p38, %p39
    %p41 = scmp.ne.s32.totalorder %s27, %s28
    %p42 = scmp.eq.s32.totalorder %s20, 1
    %p43 = por %p41, %p42
    %p45 = scmp.ne.s32.totalorder %s28, %s44
    %p46 = scmp.eq.s32.totalorder %s20, 0
    %p47 = por %p45, %p46
    %s49 = sadd.s32 %s48, 1
    %p52 = scmp.eq.s32.totalorder %s14, 1
    %p53 = scmp.ne.s32.totalorder %s48, %s50
    %p54 = scmp.eq.s32.totalorder %s14, 0
    %p55 = por %p53, %p54
    %p56 = scmp.ne.s32.totalorder %s48, %s50
    %p57 = scmp.eq.s32.totalorder %s19, 1
    %p58 = por %p56, %p57
    %p59 = scmp.ne.s32.totalorder %s50, %s51
    %p60 = scmp.eq.s32.totalorder %s19, 0
    %p61 = por %p59, %p60
    %p62 = scmp.ne.s32.totalorder %s50, %s51
    %p63 = scmp.eq.s32.totalorder %s20, 1
    %p64 = por %p62, %p63
    %p66 = scmp.ne.s32.totalorder %s51, %s65
    %p67 = scmp.eq.s32.totalorder %s20, 0
    %p68 = por %p66, %p67
    %s70 = sadd.s32 %s69, 1
    %p73 = scmp.eq.s32.totalorder %s14, 1
    %p74 = scmp.ne.s32.totalorder %s69, %s71
    %p75 = scmp.eq.s32.totalorder %s14, 0
    %p76 = por %p74, %p75
    %p77 = scmp.ne.s32.totalorder %s69, %s71
    %p78 = scmp.eq.s32.totalorder %s19, 1
    %p79 = por %p77, %p78
    %p80 = scmp.ne.s32.totalorder %s71, %s72
    %p81 = scmp.eq.s32.totalorder %s19, 0
    %p82 = por %p80, %p81
    %p83 = scmp.ne.s32.totalorder %s71, %s72
    %p84 = scmp.eq.s32.totalorder %s20, 1
    %p85 = por %p83, %p84
    %p87 = scmp.ne.s32.totalorder %s72, %s86
    %p88 = scmp.eq.s32.totalorder %s20, 0
    %p89 = por %p87, %p88
    %s91 = sadd.s32 %s90, 1
    %p94 = scmp.eq.s32.totalorder %s14, 1
    %p95 = scmp.ne.s32.totalorder %s90, %s92
    %p96 = scmp.eq.s32.totalorder %s14, 0
    %p97 = por %p95, %p96
    %p98 = scmp.ne.s32.totalorder %s90, %s92
    %p99 = scmp.eq.s32.totalorder %s19, 1
    %p100 = por %p98, %p99
    %p101 = scmp.ne.s32.totalorder %s92, %s93
    %p102 = scmp.eq.s32.totalorder %s19, 0
    %p103 = por %p101, %p102
    %p104 = scmp.ne.s32.totalorder %s92, %s93
    %p105 = scmp.eq.s32.totalorder %s20, 1
    %p106 = por %p104, %p105
    %p108 = scmp.ne.s32.totalorder %s93, %s107
    %p109 = scmp.eq.s32.totalorder %s20, 0
    %p110 = por %p108, %p109
    %s112 = sadd.s32 %s111, 1
    %p115 = scmp.eq.s32.totalorder %s14, 1
    %p116 = scmp.ne.s32.totalorder %s111, %s113
    %p117 = scmp.eq.s32.totalorder %s14, 0
    %p118 = por %p116, %p117
    %p119 = scmp.ne.s32.totalorder %s111, %s113
    %p120 = scmp.eq.s32.totalorder %s19, 1
    %p121 = por %p119, %p120
    %p122 = scmp.ne.s32.totalorder %s113, %s114
    %p123 = scmp.eq.s32.totalorder %s19, 0
    %p124 = por %p122, %p123
    %p125 = scmp.ne.s32.totalorder %s113, %s114
    %p126 = scmp.eq.s32.totalorder %s20, 1
    %p127 = por %p125, %p126
    %p129 = scmp.ne.s32.totalorder %s114, %s128
    %p130 = scmp.eq.s32.totalorder %s20, 0
    %p131 = por %p129, %p130
    %s133 = sadd.s32 %s132, 1
    %p136 = scmp.eq.s32.totalorder %s14, 1
    %p137 = scmp.ne.s32.totalorder %s132, %s134
    %p138 = scmp.eq.s32.totalorder %s14, 0
    %p139 = por %p137, %p138
    %p140 = scmp.ne.s32.totalorder %s132, %s134
    %p141 = scmp.eq.s32.totalorder %s19, 1
    %p142 = por %p140, %p141
    %p143 = scmp.ne.s32.totalorder %s134, %s135
    %p144 = scmp.eq.s32.totalorder %s19, 0
    %p145 = por %p143, %p144
    %p146 = scmp.ne.s32.totalorder %s134, %s135
    %p147 = scmp.eq.s32.totalorder %s20, 1
    %p148 = por %p146, %p147
    %p150 = scmp.ne.s32.totalorder %s135, %s149
    %p151 = scmp.eq.s32.totalorder %s20, 0
    %p152 = por %p150, %p151
    %s153 = ssub.s32 %s14, %s21
    %p154 = scmp.eq.s32.totalorder %s153, 0
    %s156 = sadd.s32 %s155, 1
    %s157 = scalar_select %p154, %s155, %s156
    %p160 = pneg %p154
    %p161 = scmp.eq.s32.totalorder %s14, 1
    %p162 = por %p160, %p161
    %p163 = scmp.ne.s32.totalorder %s155, %s158
    %p164 = scmp.eq.s32.totalorder %s14, 0
    %p165 = por %p163, %p164
    %p166 = scmp.ne.s32.totalorder %s155, %s158
    %p167 = scmp.eq.s32.totalorder %s19, 1
    %p168 = por %p166, %p167
    %p169 = scmp.ne.s32.totalorder %s158, %s159
    %p170 = scmp.eq.s32.totalorder %s19, 0
    %p171 = por %p169, %p170
    %p172 = scmp.ne.s32.totalorder %s158, %s159
    %p173 = scmp.eq.s32.totalorder %s20, 1
    %p174 = por %p172, %p173
    %p176 = scmp.ne.s32.totalorder %s159, %s175
    %p177 = scmp.eq.s32.totalorder %s20, 0
    %p178 = por %p176, %p177
    %s179 = ssub.s32 %s14, %s21
    %p180 = scmp.eq.s32.totalorder %s179, 0
    %s182 = sadd.s32 %s181, 1
    %s183 = scalar_select %p180, %s181, %s182
    %p186 = pneg %p180
    %p187 = scmp.eq.s32.totalorder %s14, 1
    %p188 = por %p186, %p187
    %p189 = scmp.ne.s32.totalorder %s181, %s184
    %p190 = scmp.eq.s32.totalorder %s14, 0
    %p191 = por %p189, %p190
    %p192 = scmp.ne.s32.totalorder %s181, %s184
    %p193 = scmp.eq.s32.totalorder %s19, 1
    %p194 = por %p192, %p193
    %p195 = scmp.ne.s32.totalorder %s184, %s185
    %p196 = scmp.eq.s32.totalorder %s19, 0
    %p197 = por %p195, %p196
    %p198 = scmp.ne.s32.totalorder %s184, %s185
    %p199 = scmp.eq.s32.totalorder %s20, 1
    %p200 = por %p198, %p199
    %p202 = scmp.ne.s32.totalorder %s185, %s201
    %p203 = scmp.eq.s32.totalorder %s20, 0
    %p204 = por %p202, %p203
    %p205 = scmp.le.s32.totalorder 1, %s14
    %p206 = scmp.lt.s32.totalorder %s14, 3
    %p207 = pnand %p205, %p206
    %p208 = pneg %p207
    // Predicated region
    $region9: #{model_forward.1} parent=5 // pred_check
      _
    $region10: #{model_forward.1} parent=5 // pred_check_branch
      %210 = sbr.rel (%p207) target = $region12
    $region11: #{model_forward.1} parent=5 // pred_region
      %s211 = ssub.s32 %s14, 1
      // Predicated region
      $region13: #{model_forward.1} parent=11 // pred_check
        %p212 = pneg %p61
      $region14: #{model_forward.1} parent=11 // pred_check_branch
        %214 = sbr.rel (%p212) target = $region16
      $region15: #{model_forward.1} parent=11 // pred_region
        _
      $region16: #{model_forward.1} parent=11 // pred_fallthru
        _
      // Predicated region
      $region17: #{model_forward.1} parent=11 // pred_check
        %p215 = pneg %p82
      $region18: #{model_forward.1} parent=11 // pred_check_branch
        %217 = sbr.rel (%p215) target = $region20
      $region19: #{model_forward.1} parent=11 // pred_region
        _
      $region20: #{model_forward.1} parent=11 // pred_fallthru
        _
      // Predicated region
      $region21: #{model_forward.1} parent=11 // pred_check
        %p218 = pneg %p103
      $region22: #{model_forward.1} parent=11 // pred_check_branch
        %220 = sbr.rel (%p218) target = $region24
      $region23: #{model_forward.1} parent=11 // pred_region
        _
      $region24: #{model_forward.1} parent=11 // pred_fallthru
        _
      // Predicated region
      $region25: #{model_forward.1} parent=11 // pred_check
        %p221 = pneg %p124
      $region26: #{model_forward.1} parent=11 // pred_check_branch
        %223 = sbr.rel (%p221) target = $region28
      $region27: #{model_forward.1} parent=11 // pred_region
        _
      $region28: #{model_forward.1} parent=11 // pred_fallthru
        _
      // Predicated region
      $region29: #{model_forward.1} parent=11 // pred_check
        %p224 = pneg %p145
      $region30: #{model_forward.1} parent=11 // pred_check_branch
        %226 = sbr.rel (%p224) target = $region32
      $region31: #{model_forward.1} parent=11 // pred_region
        _
      $region32: #{model_forward.1} parent=11 // pred_fallthru
        _
    $region12: #{model_forward.1} parent=5 // pred_fallthru
      _
    %p227 = scmp.lt.s32.totalorder %s14, 2
    // Predicated region
    $region33: #{model_forward.1} parent=5 // pred_check
      %p228 = pneg %p227
    $region34: #{model_forward.1} parent=5 // pred_check_branch
      %230 = sbr.rel (%p228) target = $region36
    $region35: #{model_forward.1} parent=5 // pred_region
      // Predicated region
      $region37: #{model_forward.1} parent=35 // pred_check
        %p231 = pneg %p34
      $region38: #{model_forward.1} parent=35 // pred_check_branch
        %233 = sbr.rel (%p231) target = $region40
      $region39: #{model_forward.1} parent=35 // pred_region
        %p234 = scmp.lt.s32.totalorder %s14, 1
        %s235 = scalar_select %p234, %s14, 1
        %s236 = smul.addr %s235, 18
        %s237 = smul.addr %s236, 4
        %s238 = scalar_lea.vmem %s0, %s237
      $region40: #{model_forward.1} parent=35 // pred_fallthru
        _
    $region36: #{model_forward.1} parent=5 // pred_fallthru
      _
    %p239 = scmp.le.s32.totalorder 1, %s14
    %p240 = scmp.lt.s32.totalorder %s14, 3
    %p241 = pnand %p239, %p240
    %p242 = pneg %p241
    // Predicated region
    $region41: #{model_forward.1} parent=5 // pred_check
      _
    $region42: #{model_forward.1} parent=5 // pred_check_branch
      %244 = sbr.rel (%p241) target = $region44
    $region43: #{model_forward.1} parent=5 // pred_region
      %s245 = ssub.s32 %s14, 1
      %p246 = scmp.lt.s32.totalorder %s19, 1
      %s247 = scalar_select %p246, %s19, 1
      %s248 = smul.addr %s247, 18
      %s249 = smul.addr %s248, 4
      %s250 = scalar_lea.vmem %s0, %s249
      %p251 = pneg %p40
      %p252 = pneg %p37
      %p253 = pneg %p61
      %p254 = pneg %p58
      %p255 = pneg %p82
      %p256 = pneg %p79
      %p257 = pneg %p103
      %p258 = pneg %p100
      %p259 = pneg %p124
      %p260 = pneg %p121
      %p261 = pneg %p145
      %p262 = pneg %p142
      %p263 = pneg %p171
      %p264 = pneg %p168
      %p265 = scmp.lt.s32.totalorder %s19, 1
      %s266 = scalar_select %p265, %s19, 1
      %s267 = smul.addr %s266, 2
      %s268 = smul.addr %s267, 4
      %s269 = scalar_lea.vmem %s6, %s268
      %p270 = pneg %p197
      %p271 = pneg %p194
      %p272 = scmp.lt.s32.totalorder %s19, 1
      %s273 = scalar_select %p272, %s19, 1
      %s274 = smul.addr %s273, 2
      %s275 = smul.addr %s274, 8
      %s276 = scalar_lea.vmem %s7, %s275
      %p277 = scmp.lt.s32.totalorder %s19, 1
      %s278 = scalar_select %p277, %s19, 1
      %s279 = smul.addr %s278, 18
      %s280 = smul.addr %s279, 4
      %s281 = scalar_lea.vmem %s0, %s280
      %p282 = scmp.lt.s32.totalorder %s19, 1
      %s283 = scalar_select %p282, %s19, 1
      %s284 = smul.addr %s283, 2
      %s285 = smul.addr %s284, 4
      %s286 = scalar_lea.vmem %s6, %s285
      %p287 = scmp.lt.s32.totalorder %s19, 1
      %s288 = scalar_select %p287, %s19, 1
      %s289 = smul.addr %s288, 2
      %s290 = smul.addr %s289, 8
      %s291 = scalar_lea.vmem %s7, %s290
      %v293 = vld [vmem:[%s281] sm:$0xf]
      %v294 = vld [vmem:[%s281 + $0x4] sm:$0x1]
      %v295 = vld [vmem:[%s281 + $0x8] sm:$0xf]
      %v296 = vld [vmem:[%s281 + $0xc] sm:$0x1]
      %v297 = vld [vmem:[%s281 + $0x10] sm:$0xf]
      %v298 = vld [vmem:[%s281 + $0x14] sm:$0x1]
      %v299 = vld [vmem:[%s281 + $0x18] sm:$0xf]
      %v300 = vld [vmem:[%s281 + $0x1c] sm:$0x1]
      %v301 = vld [vmem:[%s281 + $0x20] sm:$0xf]
      %v302 = vld [vmem:[%s281 + $0x24] sm:$0x1]
      %v303 = vld [vmem:[%s281 + $0x28] sm:$0xf]
      %v304 = vld [vmem:[%s281 + $0x2c] sm:$0x1]
      %v305 = vld [vmem:[%s281 + $0x30] sm:$0xf]
      %v306 = vld [vmem:[%s281 + $0x34] sm:$0x1]
      %v307 = vld [vmem:[%s281 + $0x38] sm:$0xf]
      %v308 = vld [vmem:[%s281 + $0x3c] sm:$0x1]
      %v309 = vld [vmem:[%s281 + $0x40] sm:$0xf]
      %v310 = vld [vmem:[%s281 + $0x44] sm:$0x1]
      %v311 = vld [vmem:[%s1] sm:$0xf]
      %v312 = vld [vmem:[%s1 + $0x4] sm:$0xf]
      %vm313 = vsmask.f32 3328
      %vm314 = vsmask.f32 7440
      %vm315 = vmor %vm313, %vm314
      %v317 = vshrl.u32 %v293, 16
      %v319 = vrot.slane %v317, 4
      %v320 = vshll.u32 %v293, 16
      %v322 = vrot.slane %v320, 5
      %v323 = vor.u32 %v319, %v322
      %v324 = vrot.slane %v323, 4
      %v326 = vshll.u32 %v294, 16
      %v328 = vrot.slane %v326, 5
      %v329 = vsel %vm315, %v324, %v328
      %v331 = vshrl.u32 %v295, 16
      %v333 = vrot.slane %v331, 4
      %v334 = vshll.u32 %v295, 16
      %v336 = vrot.slane %v334, 5
      %v337 = vor.u32 %v333, %v336
      %v338 = vrot.slane %v337, 4
      %v340 = vshll.u32 %v296, 16
      %v342 = vrot.slane %v340, 5
      %v343 = vsel %vm315, %v338, %v342
      %v345 = vshrl.u32 %v297, 16
      %v347 = vrot.slane %v345, 4
      %v348 = vshll.u32 %v297, 16
      %v350 = vrot.slane %v348, 5
      %v351 = vor.u32 %v347, %v350
      %v352 = vrot.slane %v351, 4
      %v354 = vshll.u32 %v298, 16
      %v356 = vrot.slane %v354, 5
      %v357 = vsel %vm315, %v352, %v356
      %v359 = vshrl.u32 %v299, 16
      %v361 = vrot.slane %v359, 4
      %v362 = vshll.u32 %v299, 16
      %v364 = vrot.slane %v362, 5
      %v365 = vor.u32 %v361, %v364
      %v366 = vrot.slane %v365, 4
      %v368 = vshll.u32 %v300, 16
      %v370 = vrot.slane %v368, 5
      %v371 = vsel %vm315, %v366, %v370
      %v373 = vshrl.u32 %v301, 16
      %v375 = vrot.slane %v373, 4
      %v376 = vshll.u32 %v301, 16
      %v378 = vrot.slane %v376, 5
      %v379 = vor.u32 %v375, %v378
      %v380 = vrot.slane %v379, 4
      %v382 = vshll.u32 %v302, 16
      %v384 = vrot.slane %v382, 5
      %v385 = vsel %vm315, %v380, %v384
      %v387 = vshrl.u32 %v303, 16
      %v389 = vrot.slane %v387, 4
      %v390 = vshll.u32 %v303, 16
      %v392 = vrot.slane %v390, 5
      %v393 = vor.u32 %v389, %v392
      %v394 = vrot.slane %v393, 4
      %v396 = vshll.u32 %v304, 16
      %v398 = vrot.slane %v396, 5
      %v399 = vsel %vm315, %v394, %v398
      %v401 = vshrl.u32 %v305, 16
      %v403 = vrot.slane %v401, 4
      %v404 = vshll.u32 %v305, 16
      %v406 = vrot.slane %v404, 5
      %v407 = vor.u32 %v403, %v406
      %v408 = vrot.slane %v407, 4
      %v410 = vshll.u32 %v306, 16
      %v412 = vrot.slane %v410, 5
      %v413 = vsel %vm315, %v408, %v412
      %v415 = vshrl.u32 %v307, 16
      %v417 = vrot.slane %v415, 4
      %v418 = vshll.u32 %v307, 16
      %v420 = vrot.slane %v418, 5
      %v421 = vor.u32 %v417, %v420
      %v422 = vrot.slane %v421, 4
      %v424 = vshll.u32 %v308, 16
      %v426 = vrot.slane %v424, 5
      %v427 = vsel %vm315, %v422, %v426
      %v428 = vld [vmem:[%s1 + $0x8] sm:$0xf]
      %v429 = vld [vmem:[%s1 + $0xc] sm:$0x3]
      %v430 = vunpack.c.l.b16 %v329
      %v431 = vunpack.c.l.b16 %v343
      %v432 = vunpack.c.l.b16 %v357
      %v433 = vunpack.c.l.b16 %v371
      %v434 = vunpack.c.l.b16 %v385
      %v435 = vunpack.c.l.b16 %v399
      %v436 = vunpack.c.l.b16 %v413
      %v437 = vunpack.c.l.b16 %v427
      %v438 = vpack.c.b16 %v431, %v430
      %v439 = vpack.c.b16 %v433, %v432
      %v440 = vpack.c.b16 %v435, %v434
      %v441 = vpack.c.b16 %v437, %v436
      %v444 = vunpack.c.l.b16 %v428
      %v445 = vunpack.c.l.b16 %v429
      %v446 = vpack.c.b16 %v445, %v444
      %vm447 = vcmask 97280
      %v449 = vsel %vm447, %v438, 0
      %v452 = vsel %vm447, %v439, 0
      %v455 = vsel %vm447, %v440, 0
      %v458 = vsel %vm447, %v441, 0
      %vm460 = vcmask 1045504
      %v462 = vsel %vm460, %v446, 0
      %464 = vmatprep.subr.bf16.mxu0 0
      %465 = vmatpush1.bf16.msra.mxu0 %v462
      %466 = vmatprep.subr.bf16.mxu0 0
      %467 = vmatpush1.bf16.msra.mxu0 0
      %468 = vmatprep.subr.bf16.mxu0 0
      %469 = vmatpush1.bf16.msra.mxu0 0
      %470 = vmatprep.subr.bf16.mxu0 0
      %471 = vmatpush1.bf16.msra.mxu0 0
      %472 = vmatprep.subr.bf16.mxu0 0
      %473 = vmatpush1.bf16.msra.mxu0 0
      %474 = vmatprep.subr.bf16.mxu0 0
      %475 = vmatpush1.bf16.msra.mxu0 0
      %476 = vmatprep.subr.bf16.mxu0 0
      %477 = vmatpush1.bf16.msra.mxu0 0
      %478 = vmatprep.subr.bf16.mxu0 0
      %479 = vmatpush1.bf16.msra.mxu0 0
      %480 = vmatprep.subr.bf16.mxu0 0
      %481 = vmatpush1.bf16.msra.mxu0 0
      %482 = vmatprep.subr.bf16.mxu0 0
      %483 = vmatpush1.bf16.msra.mxu0 0
      %484 = vmatprep.subr.bf16.mxu0 0
      %485 = vmatpush1.bf16.msra.mxu0 0
      %486 = vmatprep.subr.bf16.mxu0 0
      %487 = vmatpush1.bf16.msra.mxu0 0
      %488 = vmatprep.subr.bf16.mxu0 0
      %489 = vmatpush1.bf16.msra.mxu0 0
      %490 = vmatprep.subr.bf16.mxu0 0
      %491 = vmatpush1.bf16.msra.mxu0 0
      %492 = vmatprep.subr.bf16.mxu0 0
      %493 = vmatpush1.bf16.msra.mxu0 0
      %494 = vmatprep.subr.bf16.mxu0 0
      %495 = vmatpush1.bf16.msra.mxu0 0
      %496 = vmatprep.mubr.bf16.mxu0 0
      %497 = vmatmul.mubr.bf16.gmra.mrb[0].mxu0 %v449
      %v498 = vpop.f32.mrb[0].mxu0
      %v499 = vadd.f32 0.0, %v498
      %v500 = vpop.f32.mrb[0].mxu0
      %v501 = vpop.f32.mrb[0].mxu0
      %v502 = vadd.f32 0.0, %v501
      %v503 = vpop.f32.mrb[0].mxu0
      %504 = vmatprep.mubr.bf16.mxu0 0
      %505 = vmatmul.mubr.bf16.gmra.mrb[0].mxu0 %v452
      %v506 = vpop.f32.mrb[0].mxu0
      %v507 = vadd.f32 0.0, %v506
      %v508 = vpop.f32.mrb[0].mxu0
      %v509 = vpop.f32.mrb[0].mxu0
      %v510 = vadd.f32 0.0, %v509
      %v511 = vpop.f32.mrb[0].mxu0
      %512 = vmatprep.mubr.bf16.mxu0 0
      %513 = vmatmul.mubr.bf16.gmra.mrb[0].mxu0 %v455
      %v514 = vpop.f32.mrb[0].mxu0
      %v515 = vadd.f32 0.0, %v514
      %v516 = vpop.f32.mrb[0].mxu0
      %v517 = vpop.f32.mrb[0].mxu0
      %v518 = vadd.f32 0.0, %v517
      %v519 = vpop.f32.mrb[0].mxu0
      %520 = vmatprep.mubr.bf16.mxu0 0
      %521 = vmatmul.mubr.bf16.gmra.mrb[0].mxu0 %v458
      %v522 = vpop.f32.mrb[0].mxu0
      %v523 = vadd.f32 0.0, %v522
      %v524 = vpop.f32.mrb[0].mxu0
      %v525 = vpop.f32.mrb[0].mxu0
      %v526 = vadd.f32 0.0, %v525
      %v527 = vpop.f32.mrb[0].mxu0
      %528 = vdwg.mxu0
      %v537 = vunpack.c.l.b16 %v293
      %v538 = vunpack.c.l.b16 %v295
      %v539 = vunpack.c.l.b16 %v297
      %v540 = vunpack.c.l.b16 %v299
      %v541 = vunpack.c.l.b16 %v301
      %v542 = vunpack.c.l.b16 %v303
      %v543 = vunpack.c.l.b16 %v305
      %v544 = vunpack.c.l.b16 %v307
      %v545 = vpack.c.b16 %v538, %v537
      %v546 = vpack.c.b16 %v540, %v539
      %v547 = vpack.c.b16 %v542, %v541
      %v548 = vpack.c.b16 %v544, %v543
      %v551 = vunpack.c.l.b16 %v311
      %v552 = vunpack.c.l.b16 %v312
      %v553 = vpack.c.b16 %v552, %v551
      %vm555 = vcmask 130048
      %v557 = vsel %vm555, %v545, 0
      %v560 = vsel %vm555, %v546, 0
      %v563 = vsel %vm555, %v547, 0
      %v566 = vsel %vm555, %v548, 0
      %568 = vmatprep.subr.bf16.mxu0 0
      %569 = vmatpush1.bf16.msra.mxu0 %v553
      %570 = vmatprep.subr.bf16.mxu0 0
      %571 = vmatpush1.bf16.msra.mxu0 0
      %572 = vmatprep.subr.bf16.mxu0 0
      %573 = vmatpush1.bf16.msra.mxu0 0
      %574 = vmatprep.subr.bf16.mxu0 0
      %575 = vmatpush1.bf16.msra.mxu0 0
      %576 = vmatprep.subr.bf16.mxu0 0
      %577 = vmatpush1.bf16.msra.mxu0 0
      %578 = vmatprep.subr.bf16.mxu0 0
      %579 = vmatpush1.bf16.msra.mxu0 0
      %580 = vmatprep.subr.bf16.mxu0 0
      %581 = vmatpush1.bf16.msra.mxu0 0
      %582 = vmatprep.subr.bf16.mxu0 0
      %583 = vmatpush1.bf16.msra.mxu0 0
      %584 = vmatprep.subr.bf16.mxu0 0
      %585 = vmatpush1.bf16.msra.mxu0 0
      %586 = vmatprep.subr.bf16.mxu0 0
      %587 = vmatpush1.bf16.msra.mxu0 0
      %588 = vmatprep.subr.bf16.mxu0 0
      %589 = vmatpush1.bf16.msra.mxu0 0
      %590 = vmatprep.subr.bf16.mxu0 0
      %591 = vmatpush1.bf16.msra.mxu0 0
      %592 = vmatprep.subr.bf16.mxu0 0
      %593 = vmatpush1.bf16.msra.mxu0 0
      %594 = vmatprep.subr.bf16.mxu0 0
      %595 = vmatpush1.bf16.msra.mxu0 0
      %596 = vmatprep.subr.bf16.mxu0 0
      %597 = vmatpush1.bf16.msra.mxu0 0
      %598 = vmatprep.subr.bf16.mxu0 0
      %599 = vmatpush1.bf16.msra.mxu0 0
      %600 = vmatprep.mubr.bf16.mxu0 0
      %601 = vmatmul.mubr.bf16.gmra.mrb[0].mxu0 %v557
      %v602 = vpop.f32.mrb[0].mxu0
      %v603 = vadd.f32 %v499, %v602
      %v604 = vpop.f32.mrb[0].mxu0
      %v605 = vpop.f32.mrb[0].mxu0
      %v606 = vadd.f32 %v502, %v605
      %v607 = vpop.f32.mrb[0].mxu0
      %608 = vmatprep.mubr.bf16.mxu0 0
      %609 = vmatmul.mubr.bf16.gmra.mrb[0].mxu0 %v560
      %v610 = vpop.f32.mrb[0].mxu0
      %v611 = vadd.f32 %v507, %v610
      %v612 = vpop.f32.mrb[0].mxu0
      %v613 = vpop.f32.mrb[0].mxu0
      %v614 = vadd.f32 %v510, %v613
      %v615 = vpop.f32.mrb[0].mxu0
      %616 = vmatprep.mubr.bf16.mxu0 0
      %617 = vmatmul.mubr.bf16.gmra.mrb[0].mxu0 %v563
      %v618 = vpop.f32.mrb[0].mxu0
      %v619 = vadd.f32 %v515, %v618
      %v620 = vpop.f32.mrb[0].mxu0
      %v621 = vpop.f32.mrb[0].mxu0
      %v622 = vadd.f32 %v518, %v621
      %v623 = vpop.f32.mrb[0].mxu0
      %624 = vmatprep.mubr.bf16.mxu0 0
      %625 = vmatmul.mubr.bf16.gmra.mrb[0].mxu0 %v566
      %v626 = vpop.f32.mrb[0].mxu0
      %v627 = vadd.f32 %v523, %v626
      %v628 = vpop.f32.mrb[0].mxu0
      %v629 = vpop.f32.mrb[0].mxu0
      %v630 = vadd.f32 %v526, %v629
      %v631 = vpop.f32.mrb[0].mxu0
      %632 = vdwg.mxu0
      %v633 = vld [vmem:[%s1 + $0xc] sm:$0xc]
      %v634 = vld [vmem:[%s1 + $0x10] sm:$0x3]
      %v636 = vunpack.c.l.b16 %v309
      %v637 = vpack.c.b16 %v539, %v538
      %v638 = vpack.c.b16 %v541, %v540
      %v639 = vpack.c.b16 %v543, %v542
      %v640 = vpack.c.b16 %v636, %v544
      %v643 = vunpack.c.l.b16 %v633
      %v644 = vunpack.c.l.b16 %v634
      %v645 = vpack.c.b16 %v644, %v643
      %v646 = vrot.slane %v645, 2
      %vm647 = vcmask 64512
      %v649 = vsel %vm647, %v637, 0
      %v652 = vsel %vm647, %v638, 0
      %v655 = vsel %vm647, %v639, 0
      %v658 = vsel %vm647, %v640, 0
      %vm660 = vcmask 1043456
      %v662 = vsel %vm660, %v646, 0
      %664 = vmatprep.subr.bf16.mxu0 0
      %665 = vmatpush1.bf16.msra.mxu0 %v662
      %666 = vmatprep.subr.bf16.mxu0 0
      %667 = vmatpush1.bf16.msra.mxu0 0
      %668 = vmatprep.subr.bf16.mxu0 0
      %669 = vmatpush1.bf16.msra.mxu0 0
      %670 = vmatprep.subr.bf16.mxu0 0
      %671 = vmatpush1.bf16.msra.mxu0 0
      %672 = vmatprep.subr.bf16.mxu0 0
      %673 = vmatpush1.bf16.msra.mxu0 0
      %674 = vmatprep.subr.bf16.mxu0 0
      %675 = vmatpush1.bf16.msra.mxu0 0
      %676 = vmatprep.subr.bf16.mxu0 0
      %677 = vmatpush1.bf16.msra.mxu0 0
      %678 = vmatprep.subr.bf16.mxu0 0
      %679 = vmatpush1.bf16.msra.mxu0 0
      %680 = vmatprep.subr.bf16.mxu0 0
      %681 = vmatpush1.bf16.msra.mxu0 0
      %682 = vmatprep.subr.bf16.mxu0 0
      %683 = vmatpush1.bf16.msra.mxu0 0
      %684 = vmatprep.subr.bf16.mxu0 0
      %685 = vmatpush1.bf16.msra.mxu0 0
      %686 = vmatprep.subr.bf16.mxu0 0
      %687 = vmatpush1.bf16.msra.mxu0 0
      %688 = vmatprep.subr.bf16.mxu0 0
      %689 = vmatpush1.bf16.msra.mxu0 0
      %690 = vmatprep.subr.bf16.mxu0 0
      %691 = vmatpush1.bf16.msra.mxu0 0
      %692 = vmatprep.subr.bf16.mxu0 0
      %693 = vmatpush1.bf16.msra.mxu0 0
      %694 = vmatprep.subr.bf16.mxu0 0
      %695 = vmatpush1.bf16.msra.mxu0 0
      %696 = vmatprep.mubr.bf16.mxu0 0
      %697 = vmatmul.mubr.bf16.gmra.mrb[0].mxu0 %v649
      %v698 = vpop.f32.mrb[0].mxu0
      %v699 = vadd.f32 0.0, %v698
      %v700 = vpop.f32.mrb[0].mxu0
      %v701 = vpop.f32.mrb[0].mxu0
      %v702 = vadd.f32 0.0, %v701
      %v703 = vpop.f32.mrb[0].mxu0
      %704 = vmatprep.mubr.bf16.mxu0 0
      %705 = vmatmul.mubr.bf16.gmra.mrb[0].mxu0 %v652
      %v706 = vpop.f32.mrb[0].mxu0
      %v707 = vadd.f32 0.0, %v706
      %v708 = vpop.f32.mrb[0].mxu0
      %v709 = vpop.f32.mrb[0].mxu0
      %v710 = vadd.f32 0.0, %v709
      %v711 = vpop.f32.mrb[0].mxu0
      %712 = vmatprep.mubr.bf16.mxu0 0
      %713 = vmatmul.mubr.bf16.gmra.mrb[0].mxu0 %v655
      %v714 = vpop.f32.mrb[0].mxu0
      %v715 = vadd.f32 0.0, %v714
      %v716 = vpop.f32.mrb[0].mxu0
      %v717 = vpop.f32.mrb[0].mxu0
      %v718 = vadd.f32 0.0, %v717
      %v719 = vpop.f32.mrb[0].mxu0
      %720 = vmatprep.mubr.bf16.mxu0 0
      %721 = vmatmul.mubr.bf16.gmra.mrb[0].mxu0 %v658
      %v722 = vpop.f32.mrb[0].mxu0
      %v723 = vadd.f32 0.0, %v722
      %v724 = vpop.f32.mrb[0].mxu0
      %v725 = vpop.f32.mrb[0].mxu0
      %v726 = vadd.f32 0.0, %v725
      %v727 = vpop.f32.mrb[0].mxu0
      %728 = vdwg.mxu0
      %v729 = vadd.f32 %v603, %v699
      %v730 = vadd.f32 %v606, %v702
      %v731 = vadd.f32 %v611, %v707
      %v732 = vadd.f32 %v614, %v710
      %v733 = vadd.f32 %v619, %v715
      %v734 = vadd.f32 %v622, %v718
      %v735 = vadd.f32 %v627, %v723
      %v736 = vadd.f32 %v630, %v726
      %v738 = vshrl.u32 %v309, 16
      %v740 = vrot.slane %v738, 4
      %v741 = vshll.u32 %v309, 16
      %v743 = vrot.slane %v741, 5
      %v744 = vor.u32 %v740, %v743
      %v745 = vrot.slane %v744, 4
      %v747 = vshll.u32 %v310, 16
      %v749 = vrot.slane %v747, 5
      %v750 = vsel %vm315, %v745, %v749
      %v751 = vld [vmem:[%s1 + $0x10] sm:$0xc]
      %v752 = vunpack.c.l.b16 %v750
      %v753 = vpack.c.b16 %v432, %v431
      %v754 = vpack.c.b16 %v434, %v433
      %v755 = vpack.c.b16 %v436, %v435
      %v756 = vpack.c.b16 %v752, %v437
      %v758 = vunpack.c.l.b16 %v751
      %v759 = vpack.c.b16 %v758, %v758
      %v760 = vrot.slane %v759, 2
      %vm761 = vcmask 31744
      %v763 = vsel %vm761, %v753, 0
      %v766 = vsel %vm761, %v754, 0
      %v769 = vsel %vm761, %v755, 0
      %v772 = vsel %vm761, %v756, 0
      %vm774 = vcmask 1041408
      %v776 = vsel %vm774, %v760, 0
      %778 = vmatprep.subr.bf16.mxu0 0
      %779 = vmatpush1.bf16.msra.mxu0 %v776
      %780 = vmatprep.subr.bf16.mxu0 0
      %781 = vmatpush1.bf16.msra.mxu0 0
      %782 = vmatprep.subr.bf16.mxu0 0
      %783 = vmatpush1.bf16.msra.mxu0 0
      %784 = vmatprep.subr.bf16.mxu0 0
      %785 = vmatpush1.bf16.msra.mxu0 0
      %786 = vmatprep.subr.bf16.mxu0 0
      %787 = vmatpush1.bf16.msra.mxu0 0
      %788 = vmatprep.subr.bf16.mxu0 0
      %789 = vmatpush1.bf16.msra.mxu0 0
      %790 = vmatprep.subr.bf16.mxu0 0
      %791 = vmatpush1.bf16.msra.mxu0 0
      %792 = vmatprep.subr.bf16.mxu0 0
      %793 = vmatpush1.bf16.msra.mxu0 0
      %794 = vmatprep.subr.bf16.mxu0 0
      %795 = vmatpush1.bf16.msra.mxu0 0
      %796 = vmatprep.subr.bf16.mxu0 0
      %797 = vmatpush1.bf16.msra.mxu0 0
      %798 = vmatprep.subr.bf16.mxu0 0
      %799 = vmatpush1.bf16.msra.mxu0 0
      %800 = vmatprep.subr.bf16.mxu0 0
      %801 = vmatpush1.bf16.msra.mxu0 0
      %802 = vmatprep.subr.bf16.mxu0 0
      %803 = vmatpush1.bf16.msra.mxu0 0
      %804 = vmatprep.subr.bf16.mxu0 0
      %805 = vmatpush1.bf16.msra.mxu0 0
      %806 = vmatprep.subr.bf16.mxu0 0
      %807 = vmatpush1.bf16.msra.mxu0 0
      %808 = vmatprep.subr.bf16.mxu0 0
      %809 = vmatpush1.bf16.msra.mxu0 0
      %810 = vmatprep.mubr.bf16.mxu0 0
      %811 = vmatmul.mubr.bf16.gmra.mrb[0].mxu0 %v763
      %v812 = vpop.f32.mrb[0].mxu0
      %v813 = vadd.f32 0.0, %v812
      %v814 = vpop.f32.mrb[0].mxu0
      %v815 = vpop.f32.mrb[0].mxu0
      %v816 = vadd.f32 0.0, %v815
      %v817 = vpop.f32.mrb[0].mxu0
      %818 = vmatprep.mubr.bf16.mxu0 0
      %819 = vmatmul.mubr.bf16.gmra.mrb[0].mxu0 %v766
      %v820 = vpop.f32.mrb[0].mxu0
      %v821 = vadd.f32 0.0, %v820
      %v822 = vpop.f32.mrb[0].mxu0
      %v823 = vpop.f32.mrb[0].mxu0
      %v824 = vadd.f32 0.0, %v823
      %v825 = vpop.f32.mrb[0].mxu0
      %826 = vmatprep.mubr.bf16.mxu0 0
      %827 = vmatmul.mubr.bf16.gmra.mrb[0].mxu0 %v769
      %v828 = vpop.f32.mrb[0].mxu0
      %v829 = vadd.f32 0.0, %v828
      %v830 = vpop.f32.mrb[0].mxu0
      %v831 = vpop.f32.mrb[0].mxu0
      %v832 = vadd.f32 0.0, %v831
      %v833 = vpop.f32.mrb[0].mxu0
      %834 = vmatprep.mubr.bf16.mxu0 0
      %835 = vmatmul.mubr.bf16.gmra.mrb[0].mxu0 %v772
      %v836 = vpop.f32.mrb[0].mxu0
      %v837 = vadd.f32 0.0, %v836
      %v838 = vpop.f32.mrb[0].mxu0
      %v839 = vpop.f32.mrb[0].mxu0
      %v840 = vadd.f32 0.0, %v839
      %v841 = vpop.f32.mrb[0].mxu0
      %842 = vdwg.mxu0
      %v843 = vadd.f32 %v729, %v813
      %v844 = vadd.f32 %v730, %v816
      %v845 = vadd.f32 %v731, %v821
      %v846 = vadd.f32 %v732, %v824
      %v847 = vadd.f32 %v733, %v829
      %v848 = vadd.f32 %v734, %v832
      %v849 = vadd.f32 %v735, %v837
      %v850 = vadd.f32 %v736, %v840
      %v851 = vld [vmem:[%s2] sm:$0x1]
      %v853 = vlaneseq
      %v854 = vshrl.u32 %v853, 7
      %v855 = vsub.s32 0, %v854
      %v856 = vrot.slane %v851, %v855
      %v858 = vadd.f32 %v843, %v856
      %v859 = vadd.f32 %v844, %v856
      %v860 = vadd.f32 %v845, %v856
      %v861 = vadd.f32 %v846, %v856
      %v862 = vadd.f32 %v847, %v856
      %v863 = vadd.f32 %v848, %v856
      %v864 = vadd.f32 %v849, %v856
      %v865 = vadd.f32 %v850, %v856
      %v866 = vmax.f32 %v858, 0.0
      %v867 = vmax.f32 %v859, 0.0
      %v868 = vmax.f32 %v860, 0.0
      %v869 = vmax.f32 %v861, 0.0
      %v870 = vmax.f32 %v862, 0.0
      %v871 = vmax.f32 %v863, 0.0
      %v872 = vmax.f32 %v864, 0.0
      %v873 = vmax.f32 %v865, 0.0
      %v874 = vpack.c.bf16 %v867, %v866
      %v875 = vpack.c.bf16 %v869, %v868
      %v876 = vpack.c.bf16 %v871, %v870
      %v877 = vpack.c.bf16 %v873, %v872
      %v878 = vld [vmem:[%s3] sm:$0xf]
      %v879 = vld [vmem:[%s3 + $0x4] sm:$0xf]
      %v880 = vld [vmem:[%s4] sm:$0xff]
      %v881 = vld [vmem:[%s4 + $0x8] sm:$0xff]
      %883 = vset.pattern.permute.xlu0 0
      %884 = vperm.xlu0 %883, %v880
      %v885 = vpop.permute.xlu0 %884
      %888 = vset.pattern.permute.xlu0 0
      %889 = vperm.xlu0 %888, %v881
      %v890 = vpop.permute.xlu0 %889
      %v894 = vunpack.c.l.b16 %v878
      %v895 = vunpack.c.l.b16 %v879
      %v896 = vpack.c.b16 %v895, %v894
      %v898 = vsel %vm555, %v896, 0
      %v901 = vsel %vm555, %v874, 0
      %v904 = vsel %vm555, %v875, 0
      %v907 = vsel %vm555, %v876, 0
      %v910 = vsel %vm555, %v877, 0
      %912 = vmatprep.subr.bf16.mxu0 0
      %913 = vmatpush1.bf16.xpose.msra.mxu0 %v901
      %914 = vmatprep.subr.bf16.mxu0 0
      %915 = vmatpush1.bf16.xpose.msra.mxu0 %v904
      %916 = vmatprep.subr.bf16.mxu0 0
      %917 = vmatpush1.bf16.xpose.msra.mxu0 %v907
      %918 = vmatprep.subr.bf16.mxu0 0
      %919 = vmatpush1.bf16.xpose.msra.mxu0 %v910
      %920 = vmatprep.subr.bf16.mxu0 0
      %921 = vmatpush1.bf16.xpose.msra.mxu0 0
      %922 = vmatprep.subr.bf16.mxu0 0
      %923 = vmatpush1.bf16.xpose.msra.mxu0 0
      %924 = vmatprep.subr.bf16.mxu0 0
      %925 = vmatpush1.bf16.xpose.msra.mxu0 0
      %926 = vmatprep.subr.bf16.mxu0 0
      %927 = vmatpush1.bf16.xpose.msra.mxu0 0
      %928 = vmatprep.subr.bf16.mxu0 0
      %929 = vmatpush1.bf16.xpose.msra.mxu0 0
      %930 = vmatprep.subr.bf16.mxu0 0
      %931 = vmatpush1.bf16.xpose.msra.mxu0 0
      %932 = vmatprep.subr.bf16.mxu0 0
      %933 = vmatpush1.bf16.xpose.msra.mxu0 0
      %934 = vmatprep.subr.bf16.mxu0 0
      %935 = vmatpush1.bf16.xpose.msra.mxu0 0
      %936 = vmatprep.subr.bf16.mxu0 0
      %937 = vmatpush1.bf16.xpose.msra.mxu0 0
      %938 = vmatprep.subr.bf16.mxu0 0
      %939 = vmatpush1.bf16.xpose.msra.mxu0 0
      %940 = vmatprep.subr.bf16.mxu0 0
      %941 = vmatpush1.bf16.xpose.msra.mxu0 0
      %942 = vmatprep.subr.bf16.mxu0 0
      %943 = vmatpush1.bf16.xpose.msra.mxu0 0
      %944 = vmatprep.mubr.bf16.mxu0 0
      %945 = vmatmul.mubr.bf16.gmra.mrb[0].mxu0 %v898
      %v946 = vpop.f32.mrb[0].mxu0
      %v947 = vadd.f32 %v885, %v946
      %v948 = vpop.f32.mrb[0].mxu0
      %v949 = vpop.f32.mrb[0].mxu0
      %v950 = vadd.f32 %v890, %v949
      %v951 = vpop.f32.mrb[0].mxu0
      %952 = vdwg.mxu0
      %v953 = vmax.f32 %v947, 0.0
      %v954 = vmax.f32 %v950, 0.0
      %v955 = vpack.c.bf16 %v954, %v953
      %v957 = vunpack.c.l.b16 %v955
      %v958 = vunpack.c.h.b16 %v955
      %v959 = vpack.c.b16 %v957, %v957
      %v960 = vpack.c.b16 %v958, %v958
      %vm963 = vcmask 519168
      %964 = vst.msk [vmem:[%s286] sm:$0xf] %vm963, %v959
      %965 = vst.msk [vmem:[%s286 + $0x4] sm:$0xf] %vm963, %v960
      %v966 = vld [vmem:[%s5] sm:$0xff]
      %v967 = vld [vmem:[%s5 + $0x8] sm:$0xff]
      %v968 = vld [vmem:[%s5 + $0x10] sm:$0xff]
      %v969 = vld [vmem:[%s5 + $0x18] sm:$0xff]
      %v970 = vld [vmem:[%s5 + $0x20] sm:$0xff]
      %v971 = vld [vmem:[%s5 + $0x28] sm:$0xff]
      %v972 = vld [vmem:[%s5 + $0x30] sm:$0xff]
      %v973 = vld [vmem:[%s5 + $0x38] sm:$0xff]
      %vm974 = vcmask 523264
      %v976 = vsel %vm974, %v953, 0
      %v979 = vsel %vm974, %v954, 0
      %981 = vmatprep.subr.mxu0 0.0
      %982 = vmatpush1.msra.mxu0 %v966
      %983 = vmatprep.subr.mxu0 0.0
      %984 = vmatpush1.msra.mxu0 %v967
      %985 = vmatprep.subr.mxu0 0.0
      %986 = vmatpush1.msra.mxu0 %v968
      %987 = vmatprep.subr.mxu0 0.0
      %988 = vmatpush1.msra.mxu0 %v969
      %989 = vmatprep.subr.mxu0 0.0
      %990 = vmatpush1.msra.mxu0 %v970
      %991 = vmatprep.subr.mxu0 0.0
      %992 = vmatpush1.msra.mxu0 %v971
      %993 = vmatprep.subr.mxu0 0.0
      %994 = vmatpush1.msra.mxu0 %v972
      %995 = vmatprep.subr.mxu0 0.0
      %996 = vmatpush1.msra.mxu0 %v973
      %997 = vmatprep.subr.mxu0 0.0
      %998 = vmatpush1.msra.mxu0 0.0
      %999 = vmatprep.subr.mxu0 0.0
      %1000 = vmatpush1.msra.mxu0 0.0
      %1001 = vmatprep.subr.mxu0 0.0
      %1002 = vmatpush1.msra.mxu0 0.0
      %1003 = vmatprep.subr.mxu0 0.0
      %1004 = vmatpush1.msra.mxu0 0.0
      %1005 = vmatprep.subr.mxu0 0.0
      %1006 = vmatpush1.msra.mxu0 0.0
      %1007 = vmatprep.subr.mxu0 0.0
      %1008 = vmatpush1.msra.mxu0 0.0
      %1009 = vmatprep.subr.mxu0 0.0
      %1010 = vmatpush1.msra.mxu0 0.0
      %1011 = vmatprep.subr.mxu0 0.0
      %1012 = vmatpush1.msra.mxu0 0.0
      %1013 = vmatprep.subr.mxu0 0.0
      %1014 = vmatpush1.msra.mxu0 0.0
      %1015 = vmatprep.subr.mxu0 0.0
      %1016 = vmatpush1.msra.mxu0 0.0
      %1017 = vmatprep.subr.mxu0 0.0
      %1018 = vmatpush1.msra.mxu0 0.0
      %1019 = vmatprep.subr.mxu0 0.0
      %1020 = vmatpush1.msra.mxu0 0.0
      %1021 = vmatprep.subr.mxu0 0.0
      %1022 = vmatpush1.msra.mxu0 0.0
      %1023 = vmatprep.subr.mxu0 0.0
      %1024 = vmatpush1.msra.mxu0 0.0
      %1025 = vmatprep.subr.mxu0 0.0
      %1026 = vmatpush1.msra.mxu0 0.0
      %1027 = vmatprep.subr.mxu0 0.0
      %1028 = vmatpush1.msra.mxu0 0.0
      %1029 = vmatprep.subr.mxu0 0.0
      %1030 = vmatpush1.msra.mxu0 0.0
      %1031 = vmatprep.subr.mxu0 0.0
      %1032 = vmatpush1.msra.mxu0 0.0
      %1033 = vmatprep.subr.mxu0 0.0
      %1034 = vmatpush1.msra.mxu0 0.0
      %1035 = vmatprep.subr.mxu0 0.0
      %1036 = vmatpush1.msra.mxu0 0.0
      %1037 = vmatprep.subr.mxu0 0.0
      %1038 = vmatpush1.msra.mxu0 0.0
      %1039 = vmatprep.subr.mxu0 0.0
      %1040 = vmatpush1.msra.mxu0 0.0
      %1041 = vmatprep.subr.mxu0 0.0
      %1042 = vmatpush1.msra.mxu0 0.0
      %1043 = vmatprep.subr.mxu0 0.0
      %1044 = vmatpush1.msra.mxu0 0.0
      %1045 = vmatprep.mubr.f32.mxu0 0.0
      %1046 = vmatmul.mubr.f32.gmra.mrb[0].mxu0 %v976
      %v1047 = vpop.f32.mrb[0].mxu0
      %v1048 = vadd.f32 0.0, %v1047
      %v1049 = vpop.f32.mrb[0].mxu0
      %1050 = vmatprep.mubr.f32.mxu0 0.0
      %1051 = vmatmul.mubr.f32.gmra.mrb[0].mxu0 %v979
      %v1052 = vpop.f32.mrb[0].mxu0
      %v1053 = vadd.f32 0.0, %v1052
      %v1054 = vpop.f32.mrb[0].mxu0
      %1055 = vdwg.mxu0
      %1056 = vst.msk [vmem:[%s291] sm:$0xff] %vm647, %v1048
      %1057 = vst.msk [vmem:[%s291 + $0x8] sm:$0xff] %vm647, %v1053
      %p1058 = scmp.lt.s32.totalorder %s19, 1
      %s1059 = scalar_select %p1058, %s19, 1
      %s1060 = smul.addr %s1059, 2
      %s1061 = smul.addr %s1060, 4
      %s1062 = scalar_lea.vmem %s6, %s1061
      %p1063 = scmp.lt.s32.totalorder %s19, 1
      %s1064 = scalar_select %p1063, %s19, 1
      %s1065 = smul.addr %s1064, 2
      %s1066 = smul.addr %s1065, 8
      %s1067 = scalar_lea.vmem %s7, %s1066
      // Predicated region
      $region45: #{model_forward.1} parent=43 // pred_check
        %p1068 = pneg %p168
      $region46: #{model_forward.1} parent=43 // pred_check_branch
        %1070 = sbr.rel (%p1068) target = $region48
      $region47: #{model_forward.1} parent=43 // pred_region
        _
      $region48: #{model_forward.1} parent=43 // pred_fallthru
        _
      // Predicated region
      $region49: #{model_forward.1} parent=43 // pred_check
        %p1071 = pneg %p194
      $region50: #{model_forward.1} parent=43 // pred_check_branch
        %1073 = sbr.rel (%p1071) target = $region52
      $region51: #{model_forward.1} parent=43 // pred_region
        _
      $region52: #{model_forward.1} parent=43 // pred_fallthru
        _
    $region44: #{model_forward.1} parent=5 // pred_fallthru
      _
    %p1074 = scmp.le.s32.totalorder 2, %s14
    // Predicated region
    $region53: #{model_forward.1} parent=5 // pred_check
      %p1075 = pneg %p1074
    $region54: #{model_forward.1} parent=5 // pred_check_branch
      %1077 = sbr.rel (%p1075) target = $region56
    $region55: #{model_forward.1} parent=5 // pred_region
      %s1078 = ssub.s32 %s14, 2
      // Predicated region
      $region57: #{model_forward.1} parent=55 // pred_check
        %p1079 = pneg %p174
      $region58: #{model_forward.1} parent=55 // pred_check_branch
        %1081 = sbr.rel (%p1079) target = $region60
      $region59: #{model_forward.1} parent=55 // pred_region
        %p1082 = scmp.lt.s32.totalorder %s20, 1
        %s1083 = scalar_select %p1082, %s20, 1
        %s1084 = smul.addr %s1083, 2
        %s1085 = smul.addr %s1084, 4
        %s1086 = scalar_lea.vmem %s6, %s1085
      $region60: #{model_forward.1} parent=55 // pred_fallthru
        _
      // Predicated region
      $region61: #{model_forward.1} parent=55 // pred_check
        %p1087 = pneg %p200
      $region62: #{model_forward.1} parent=55 // pred_check_branch
        %1089 = sbr.rel (%p1087) target = $region64
      $region63: #{model_forward.1} parent=55 // pred_region
        %p1090 = scmp.lt.s32.totalorder %s20, 1
        %s1091 = scalar_select %p1090, %s20, 1
        %s1092 = smul.addr %s1091, 2
        %s1093 = smul.addr %s1092, 8
        %s1094 = scalar_lea.vmem %s7, %s1093
      $region64: #{model_forward.1} parent=55 // pred_fallthru
        _
    $region56: #{model_forward.1} parent=5 // pred_fallthru
      _
  $region6: #{model_forward.1} parent=0 // loop_footer
    %s18 = sadd.s32 1, %s14
  $region7: #{model_forward.1} parent=0 // loop_footer_branch
    %13 = sbr.rel target = $region3
  $region8: #{model_forward.1} parent=0 // loop_exit
    _

</llo_original>
